<compile_context>
chip_gen: v6e
topology: v6e:2x2x1
jax: 0.10.0
libtpu: 0.0.40
codegen_flags: <defaults>
</compile_context>

<pallas_src>
import functools
import math

import jax
import jax.numpy as jnp
from jax.experimental import pallas as pl
from jax.experimental.pallas import tpu as pltpu

_LANE = 128      # lane width: last dim multiple
_SUBLANE = 8     # sublane width: second-last dim multiple

# Conservative per-call budget for resident weights+biases. Kept well below the
# smallest physical VMEM (v7x: 64 MiB) to leave room for activation tiles,
# f32 intermediates and double-buffered I/O.
_WEIGHT_VMEM_BUDGET = 40 * 2**20


def _round_up(n, m):
    return ((n + m - 1) // m) * m


def _fused_mlp_kernel(*refs, relu, out_dims):
    """refs = (x_ref, w_0, ..., w_{n-1}, b_all_ref, o_ref).

    x_ref : (tm, in_pad0)           bf16 activations
    w_i   : (in_pad_i, out_pad_i)   bf16, pre-transposed (y = x @ W^T + b)
    b_all : (n, max_out_pad)        f32, row i = padded bias of layer i
    o_ref : (tm, out_pad_{n-1})     output tile
    """
    n = len(relu)
    x_ref = refs[0]
    w_refs = refs[1:1 + n]
    b_ref = refs[1 + n]
    o_ref = refs[2 + n]

    h = x_ref[...]                                       # bf16, straight to MXU
    y = None
    for i in range(n):
        y = jnp.dot(h, w_refs[i][...],
                    preferred_element_type=jnp.float32)  # MXU, f32 accumulate
        y = y + b_ref[i:i + 1, :out_dims[i]]             # f32 epilogue (VPU)
        if relu[i]:
            y = jnp.maximum(y, 0.0)                      # ReLU (VPU)
        if i < n - 1:
            h = y.astype(jnp.bfloat16)                   # next MXU operand
    o_ref[...] = y.astype(o_ref.dtype)


def init_dnn_params(key, input_size, hidden_sizes, num_classes):
    """Mimics nn.Linear default init: U(-1/sqrt(fan_in), 1/sqrt(fan_in)) for W and b.
    Weights are stored transposed as (in_features, out_features) f32."""
    layer_sizes = [input_size] + list(hidden_sizes) + [num_classes]
    params = []
    for i in range(len(layer_sizes) - 1):
        fan_in, fan_out = layer_sizes[i], layer_sizes[i + 1]
        key, kw, kb = jax.random.split(key, 3)
        bound = 1.0 / math.sqrt(fan_in)
        w_t = jax.random.uniform(kw, (fan_in, fan_out), jnp.float32, -bound, bound)
        b = jax.random.uniform(kb, (fan_out,), jnp.float32, -bound, bound)
        params.append((w_t, b))
    return params


def pack_params(params):
    """Pad feature dims to multiples of 128, cast weights to bf16 (done once).

    Zero padding keeps the math exact: padded input columns hit zero weight rows,
    padded output columns get zero weight columns + zero bias, and ReLU(0)=0 feeds
    zeros into the next layer's zero weight rows.
    """
    packed = []
    for w_t, b in params:
        fin, fout = w_t.shape
        ip, op = _round_up(fin, _LANE), _round_up(fout, _LANE)
        w_p = jnp.zeros((ip, op), jnp.bfloat16).at[:fin, :fout].set(
            w_t.astype(jnp.bfloat16))
        b_p = jnp.zeros((1, op), jnp.float32).at[:, :fout].set(b[None, :])
        packed.append((w_p, b_p))
    return packed


def dnn_forward(packed_params, x, *, num_classes, block_batch=512,
                single_buffer_weights=True):
    """Fused forward pass matching DNN.forward (ReLU after all but the last layer).

    packed_params: list of (w_p (In_pad, Out_pad) bf16, b_p (1, Out_pad) f32)
    x            : (B, input_size) f32
    returns      : (B, num_classes) f32
    """
    num_layers = len(packed_params)
    B, In = x.shape

    # ---------------- batch tiling ----------------
    B_pad = _round_up(B, _SUBLANE)
    tm = min(block_batch, B_pad)
    if B_pad // tm < 2 and B_pad >= 2 * _SUBLANE:
        # Ensure >=2 grid steps so the "parallel" batch axis can shard across
        # both TensorCores on v7x.
        tm = _round_up((B_pad + 1) // 2, _SUBLANE)
    B_pad = _round_up(B_pad, tm)
    grid_b = B_pad // tm

    in_pad0 = packed_params[0][0].shape[0]

    # Cast activations to bf16 ONCE in the wrapper (the kernel feeds bf16 to the
    # MXU anyway) -> halves input DMA bytes. Zero-padded columns hit zero weight rows.
    x_p = jnp.zeros((B_pad, in_pad0), jnp.bfloat16).at[:B, :In].set(
        x.astype(jnp.bfloat16))

    # ---------------- group layers so each fused call fits in VMEM ----------------
    wbuf = 1 if single_buffer_weights else 2
    groups, cur, cur_bytes = [], [], 0
    for li, (w_p, _) in enumerate(packed_params):
        w_bytes = w_p.size * w_p.dtype.itemsize * wbuf
        if cur and cur_bytes + w_bytes > _WEIGHT_VMEM_BUDGET:
            groups.append(cur)
            cur, cur_bytes = [], 0
        cur.append(li)
        cur_bytes += w_bytes
    groups.append(cur)
    # TODO(synk): a single layer wider than the VMEM budget would still need a
    # K/N-tiled reduction-grid (accumulator) path; not required at these sizes.

    weight_mode = (dict(pipeline_mode=pl.Buffered(1))
                   if single_buffer_weights else {})

    h_p = x_p
    for gi, layer_ids in enumerate(groups):
        n = len(layer_ids)
        relu = tuple(li < num_layers - 1 for li in layer_ids)
        ws = [packed_params[li][0] for li in layer_ids]
        bs = [packed_params[li][1] for li in layer_ids]
        out_dims = tuple(w.shape[1] for w in ws)
        max_op = max(out_dims)

        # Pack all biases of this group into a single operand.
        b_all = jnp.zeros((n, max_op), jnp.float32)
        for i, b_p in enumerate(bs):
            b_all = b_all.at[i, :b_p.shape[1]].set(b_p[0])

        in_pad = h_p.shape[1]
        out_pad = out_dims[-1]
        last_group = gi == len(groups) - 1
        # Final output stays f32 (matches the PyTorch module); group-to-group
        # intermediates stay bf16 (they are re-cast to bf16 for the next dot anyway).
        out_dtype = jnp.float32 if last_group else jnp.bfloat16
        out_isize = jnp.dtype(out_dtype).itemsize

        operands = [h_p]
        in_specs = [pl.BlockSpec((tm, in_pad), lambda i: (i, 0))]
        for w in ws:
            ip, op = w.shape
            in_specs.append(pl.BlockSpec((ip, op), lambda i: (0, 0), **weight_mode))
            operands.append(w)
        in_specs.append(pl.BlockSpec((n, max_op), lambda i: (0, 0), **weight_mode))
        operands.append(b_all)

        # Explicit VMEM budget from actual block sizes, with headroom.
        w_bytes = (sum(w.size * 2 for w in ws) + b_all.size * 4) * wbuf
        act_bytes = 2 * tm * in_pad * 2 + 2 * tm * out_pad * out_isize
        inter_bytes = sum(tm * op * 6 for op in out_dims)  # f32 + bf16 temps
        vmem_limit = int(min(max(2 * (w_bytes + act_bytes + inter_bytes) + (1 << 20),
                                 32 * 2**20),
                             64 * 2**20))

        flops = 2 * B_pad * sum(w.shape[0] * w.shape[1] for w in ws)
        bytes_accessed = (h_p.size * 2 + sum(w.size * 2 for w in ws)
                          + b_all.size * 4 + B_pad * out_pad * out_isize)

        kernel = functools.partial(_fused_mlp_kernel, relu=relu, out_dims=out_dims)
        h_p = pl.pallas_call(
            kernel,
            out_shape=jax.ShapeDtypeStruct((B_pad, out_pad), out_dtype),
            grid=(grid_b,),
            in_specs=in_specs,
            out_specs=pl.BlockSpec((tm, out_pad), lambda i: (i, 0)),
            compiler_params=pltpu.CompilerParams(
                dimension_semantics=("parallel",),
                vmem_limit_bytes=vmem_limit,
            ),
            cost_estimate=pl.CostEstimate(
                flops=flops, transcendentals=0, bytes_accessed=bytes_accessed),
        )(*operands)

    return h_p[:B, :num_classes]


if __name__ == "__main__":
    key = jax.random.PRNGKey(0)
    batch = 16
    input_size = 32
    hidden_sizes = [64, 32]
    num_classes = 10

    key, kx = jax.random.split(key)
    x = jax.random.normal(kx, (batch, input_size), jnp.float32)

    params = init_dnn_params(key, input_size, hidden_sizes, num_classes)
    packed = pack_params(params)

    def build_fwd(single_buffer_weights):
        return jax.jit(functools.partial(
            dnn_forward, num_classes=num_classes,
            single_buffer_weights=single_buffer_weights))

    fwd = build_fwd(True)
    try:
        out = jax.block_until_ready(fwd(packed, x))
    except Exception:
        # Portability guard: if this JAX build rejects single-buffered
        # (pl.Buffered(1)) weight blocks, fall back to default double-buffering.
        fwd = build_fwd(False)
        out = jax.block_until_ready(fwd(packed, x))

    # Reference mirroring the kernel numerics (bf16 matmul operands, f32 accumulate,
    # f32 bias/ReLU) so tolerances stay tight.
    ref = x.astype(jnp.bfloat16).astype(jnp.float32)
    n = len(params)
    for i, (w_t, b) in enumerate(params):
        ref = jnp.dot(ref.astype(jnp.bfloat16).astype(jnp.float32),
                      w_t.astype(jnp.bfloat16).astype(jnp.float32)) + b
        if i < n - 1:
            ref = jnp.maximum(ref, 0.0)

    # Pure-f32 reference (true PyTorch numerics) with a loose bf16 tolerance.
    ref32 = x
    for i, (w_t, b) in enumerate(params):
        ref32 = jnp.dot(ref32, w_t) + b
        if i < n - 1:
            ref32 = jnp.maximum(ref32, 0.0)

    assert out.shape == (batch, num_classes)
    assert jnp.allclose(out, ref, atol=1e-3, rtol=1e-3), float(
        jnp.max(jnp.abs(out - ref)))
    assert jnp.allclose(out, ref32, atol=1e-1, rtol=1e-1), float(
        jnp.max(jnp.abs(out - ref32)))

    print("KERNEL_OK")
</pallas_src>

<mosaic_0001>
module attributes {stable_mosaic.version = 11 : i64} {
  func.func @_fused_mlp_kernel(%arg0: i32, %arg1: memref<8x128xbf16, #tpu.memory_space<vmem>>, %arg2: memref<128x128xbf16, #tpu.memory_space<vmem>>, %arg3: memref<128x128xbf16, #tpu.memory_space<vmem>>, %arg4: memref<128x128xbf16, #tpu.memory_space<vmem>>, %arg5: memref<3x128xf32, #tpu.memory_space<vmem>>, %arg6: memref<8x128xf32, #tpu.memory_space<vmem>>) attributes {dimension_semantics = [#tpu.dimension_semantics<parallel>], iteration_bounds = array<i64: 2>, scalar_prefetch = 0 : i64, scratch_operands = 0 : i64, tpu.core_type = #tpu.core_type<tc>, window_params = [{transform_indices = @transform_0, window_bounds = array<i64: 8, 128>}, {pipeline_mode = #tpu.pipeline_mode<synchronous>, transform_indices = @transform_1, window_bounds = array<i64: 128, 128>}, {pipeline_mode = #tpu.pipeline_mode<synchronous>, transform_indices = @transform_2, window_bounds = array<i64: 128, 128>}, {pipeline_mode = #tpu.pipeline_mode<synchronous>, transform_indices = @transform_3, window_bounds = array<i64: 128, 128>}, {pipeline_mode = #tpu.pipeline_mode<synchronous>, transform_indices = @transform_4, window_bounds = array<i64: 3, 128>}, {transform_indices = @transform_5, window_bounds = array<i64: 8, 128>}]} {
    %c0 = arith.constant 0 : index
    %c0_0 = arith.constant 0 : index
    %0 = vector.load %arg1[%c0, %c0_0] : memref<8x128xbf16, #tpu.memory_space<vmem>>, vector<8x128xbf16>
    %c0_1 = arith.constant 0 : index
    %c0_2 = arith.constant 0 : index
    %1 = vector.load %arg2[%c0_1, %c0_2] : memref<128x128xbf16, #tpu.memory_space<vmem>>, vector<128x128xbf16>
    %cst = arith.constant dense<0.000000e+00> : vector<8x128xf32>
    %2 = tpu.matmul %0, %1, %cst {dimension_numbers = #tpu.dot_dimension_numbers<[1], [0], [0], [1], [0, 0, 1, 1], [], []>} : vector<8x128xbf16>, vector<128x128xbf16>, vector<8x128xf32> -> vector<8x128xf32>
    %c0_3 = arith.constant 0 : index
    %c0_4 = arith.constant 0 : index
    %3 = vector.load %arg5[%c0_3, %c0_4] : memref<3x128xf32, #tpu.memory_space<vmem>>, vector<1x128xf32>
    %4 = vector.broadcast %3 : vector<1x128xf32> to vector<8x128xf32>
    %5 = arith.addf %2, %4 : vector<8x128xf32>
    %cst_5 = arith.constant 0.000000e+00 : f32
    %6 = vector.broadcast %cst_5 : f32 to vector<8x128xf32>
    %7 = arith.maximumf %5, %6 : vector<8x128xf32>
    %8 = arith.truncf %7 : vector<8x128xf32> to vector<8x128xbf16>
    %c0_6 = arith.constant 0 : index
    %c0_7 = arith.constant 0 : index
    %9 = vector.load %arg3[%c0_6, %c0_7] : memref<128x128xbf16, #tpu.memory_space<vmem>>, vector<128x128xbf16>
    %cst_8 = arith.constant dense<0.000000e+00> : vector<8x128xf32>
    %10 = tpu.matmul %8, %9, %cst_8 {dimension_numbers = #tpu.dot_dimension_numbers<[1], [0], [0], [1], [0, 0, 1, 1], [], []>} : vector<8x128xbf16>, vector<128x128xbf16>, vector<8x128xf32> -> vector<8x128xf32>
    %c1 = arith.constant 1 : index
    %c0_9 = arith.constant 0 : index
    %11 = vector.load %arg5[%c1, %c0_9] : memref<3x128xf32, #tpu.memory_space<vmem>>, vector<1x128xf32>
    %12 = vector.broadcast %11 : vector<1x128xf32> to vector<8x128xf32>
    %13 = arith.addf %10, %12 : vector<8x128xf32>
    %cst_10 = arith.constant 0.000000e+00 : f32
    %14 = vector.broadcast %cst_10 : f32 to vector<8x128xf32>
    %15 = arith.maximumf %13, %14 : vector<8x128xf32>
    %16 = arith.truncf %15 : vector<8x128xf32> to vector<8x128xbf16>
    %c0_11 = arith.constant 0 : index
    %c0_12 = arith.constant 0 : index
    %17 = vector.load %arg4[%c0_11, %c0_12] : memref<128x128xbf16, #tpu.memory_space<vmem>>, vector<128x128xbf16>
    %cst_13 = arith.constant dense<0.000000e+00> : vector<8x128xf32>
    %18 = tpu.matmul %16, %17, %cst_13 {dimension_numbers = #tpu.dot_dimension_numbers<[1], [0], [0], [1], [0, 0, 1, 1], [], []>} : vector<8x128xbf16>, vector<128x128xbf16>, vector<8x128xf32> -> vector<8x128xf32>
    %c2 = arith.constant 2 : index
    %c0_14 = arith.constant 0 : index
    %19 = vector.load %arg5[%c2, %c0_14] : memref<3x128xf32, #tpu.memory_space<vmem>>, vector<1x128xf32>
    %20 = vector.broadcast %19 : vector<1x128xf32> to vector<8x128xf32>
    %21 = arith.addf %18, %20 : vector<8x128xf32>
    %c0_15 = arith.constant 0 : index
    %c0_16 = arith.constant 0 : index
    %22 = vector.load %arg6[%c0_15, %c0_16] : memref<8x128xf32, #tpu.memory_space<vmem>>, vector<8x128xf32>
    tpu.vector_store %arg6[%c0_15, %c0_16], %21 {strides = array<i32>} : memref<8x128xf32, #tpu.memory_space<vmem>>, vector<8x128xf32>,
    return
  }
  func.func @transform_0(%arg0: i32) -> (i32, i32) {
    %c0_i32 = arith.constant 0 : i32
    %c0_i32_0 = arith.constant 0 : i32
    return %arg0, %c0_i32 : i32, i32
  }
  func.func @transform_1(%arg0: i32) -> (i32, i32) {
    %c0_i32 = arith.constant 0 : i32
    %c0_i32_0 = arith.constant 0 : i32
    %c0_i32_1 = arith.constant 0 : i32
    return %c0_i32, %c0_i32_0 : i32, i32
  }
  func.func @transform_2(%arg0: i32) -> (i32, i32) {
    %c0_i32 = arith.constant 0 : i32
    %c0_i32_0 = arith.constant 0 : i32
    %c0_i32_1 = arith.constant 0 : i32
    return %c0_i32, %c0_i32_0 : i32, i32
  }
  func.func @transform_3(%arg0: i32) -> (i32, i32) {
    %c0_i32 = arith.constant 0 : i32
    %c0_i32_0 = arith.constant 0 : i32
    %c0_i32_1 = arith.constant 0 : i32
    return %c0_i32, %c0_i32_0 : i32, i32
  }
  func.func @transform_4(%arg0: i32) -> (i32, i32) {
    %c0_i32 = arith.constant 0 : i32
    %c0_i32_0 = arith.constant 0 : i32
    %c0_i32_1 = arith.constant 0 : i32
    return %c0_i32, %c0_i32_0 : i32, i32
  }
  func.func @transform_5(%arg0: i32) -> (i32, i32) {
    %c0_i32 = arith.constant 0 : i32
    %c0_i32_0 = arith.constant 0 : i32
    return %arg0, %c0_i32 : i32, i32
  }
}

module attributes {stable_mosaic.version = 11 : i64} {
  func.func @_fused_mlp_kernel(%arg0: i32, %arg1: memref<8x128xbf16, #tpu.memory_space<vmem>>, %arg2: memref<128x128xbf16, #tpu.memory_space<vmem>>, %arg3: memref<128x128xbf16, #tpu.memory_space<vmem>>, %arg4: memref<128x128xbf16, #tpu.memory_space<vmem>>, %arg5: memref<3x128xf32, #tpu.memory_space<vmem>>, %arg6: memref<8x128xf32, #tpu.memory_space<vmem>>) attributes {dimension_semantics = [#tpu.dimension_semantics<parallel>], iteration_bounds = array<i64: 2>, scalar_prefetch = 0 : i64, scratch_operands = 0 : i64, tpu.core_type = #tpu.core_type<tc>, window_params = [{transform_indices = @transform_0, window_bounds = array<i64: 8, 128>}, {pipeline_mode = #tpu.pipeline_mode<synchronous>, transform_indices = @transform_1, window_bounds = array<i64: 128, 128>}, {pipeline_mode = #tpu.pipeline_mode<synchronous>, transform_indices = @transform_2, window_bounds = array<i64: 128, 128>}, {pipeline_mode = #tpu.pipeline_mode<synchronous>, transform_indices = @transform_3, window_bounds = array<i64: 128, 128>}, {pipeline_mode = #tpu.pipeline_mode<synchronous>, transform_indices = @transform_4, window_bounds = array<i64: 3, 128>}, {transform_indices = @transform_5, window_bounds = array<i64: 8, 128>}]} {
    %c0 = arith.constant 0 : index
    %c0_0 = arith.constant 0 : index
    %0 = vector.load %arg1[%c0, %c0_0] : memref<8x128xbf16, #tpu.memory_space<vmem>>, vector<8x128xbf16>
    %c0_1 = arith.constant 0 : index
    %c0_2 = arith.constant 0 : index
    %1 = vector.load %arg2[%c0_1, %c0_2] : memref<128x128xbf16, #tpu.memory_space<vmem>>, vector<128x128xbf16>
    %cst = arith.constant dense<0.000000e+00> : vector<8x128xf32>
    %2 = tpu.matmul %0, %1, %cst {dimension_numbers = #tpu.dot_dimension_numbers<[1], [0], [0], [1], [0, 0, 1, 1], [], []>} : vector<8x128xbf16>, vector<128x128xbf16>, vector<8x128xf32> -> vector<8x128xf32>
    %c0_3 = arith.constant 0 : index
    %c0_4 = arith.constant 0 : index
    %3 = vector.load %arg5[%c0_3, %c0_4] : memref<3x128xf32, #tpu.memory_space<vmem>>, vector<1x128xf32>
    %4 = vector.broadcast %3 : vector<1x128xf32> to vector<8x128xf32>
    %5 = arith.addf %2, %4 : vector<8x128xf32>
    %cst_5 = arith.constant 0.000000e+00 : f32
    %6 = vector.broadcast %cst_5 : f32 to vector<8x128xf32>
    %7 = arith.maximumf %5, %6 : vector<8x128xf32>
    %8 = arith.truncf %7 : vector<8x128xf32> to vector<8x128xbf16>
    %c0_6 = arith.constant 0 : index
    %c0_7 = arith.constant 0 : index
    %9 = vector.load %arg3[%c0_6, %c0_7] : memref<128x128xbf16, #tpu.memory_space<vmem>>, vector<128x128xbf16>
    %cst_8 = arith.constant dense<0.000000e+00> : vector<8x128xf32>
    %10 = tpu.matmul %8, %9, %cst_8 {dimension_numbers = #tpu.dot_dimension_numbers<[1], [0], [0], [1], [0, 0, 1, 1], [], []>} : vector<8x128xbf16>, vector<128x128xbf16>, vector<8x128xf32> -> vector<8x128xf32>
    %c1 = arith.constant 1 : index
    %c0_9 = arith.constant 0 : index
    %11 = vector.load %arg5[%c1, %c0_9] : memref<3x128xf32, #tpu.memory_space<vmem>>, vector<1x128xf32>
    %12 = vector.broadcast %11 : vector<1x128xf32> to vector<8x128xf32>
    %13 = arith.addf %10, %12 : vector<8x128xf32>
    %cst_10 = arith.constant 0.000000e+00 : f32
    %14 = vector.broadcast %cst_10 : f32 to vector<8x128xf32>
    %15 = arith.maximumf %13, %14 : vector<8x128xf32>
    %16 = arith.truncf %15 : vector<8x128xf32> to vector<8x128xbf16>
    %c0_11 = arith.constant 0 : index
    %c0_12 = arith.constant 0 : index
    %17 = vector.load %arg4[%c0_11, %c0_12] : memref<128x128xbf16, #tpu.memory_space<vmem>>, vector<128x128xbf16>
    %cst_13 = arith.constant dense<0.000000e+00> : vector<8x128xf32>
    %18 = tpu.matmul %16, %17, %cst_13 {dimension_numbers = #tpu.dot_dimension_numbers<[1], [0], [0], [1], [0, 0, 1, 1], [], []>} : vector<8x128xbf16>, vector<128x128xbf16>, vector<8x128xf32> -> vector<8x128xf32>
    %c2 = arith.constant 2 : index
    %c0_14 = arith.constant 0 : index
    %19 = vector.load %arg5[%c2, %c0_14] : memref<3x128xf32, #tpu.memory_space<vmem>>, vector<1x128xf32>
    %20 = vector.broadcast %19 : vector<1x128xf32> to vector<8x128xf32>
    %21 = arith.addf %18, %20 : vector<8x128xf32>
    %c0_15 = arith.constant 0 : index
    %c0_16 = arith.constant 0 : index
    %22 = vector.load %arg6[%c0_15, %c0_16] : memref<8x128xf32, #tpu.memory_space<vmem>>, vector<8x128xf32>
    tpu.vector_store %arg6[%c0_15, %c0_16], %21 {strides = array<i32>} : memref<8x128xf32, #tpu.memory_space<vmem>>, vector<8x128xf32>,
    return
  }
  func.func @transform_0(%arg0: i32) -> (i32, i32) {
    %c0_i32 = arith.constant 0 : i32
    %c0_i32_0 = arith.constant 0 : i32
    return %arg0, %c0_i32 : i32, i32
  }
  func.func @transform_1(%arg0: i32) -> (i32, i32) {
    %c0_i32 = arith.constant 0 : i32
    %c0_i32_0 = arith.constant 0 : i32
    %c0_i32_1 = arith.constant 0 : i32
    return %c0_i32, %c0_i32_0 : i32, i32
  }
  func.func @transform_2(%arg0: i32) -> (i32, i32) {
    %c0_i32 = arith.constant 0 : i32
    %c0_i32_0 = arith.constant 0 : i32
    %c0_i32_1 = arith.constant 0 : i32
    return %c0_i32, %c0_i32_0 : i32, i32
  }
  func.func @transform_3(%arg0: i32) -> (i32, i32) {
    %c0_i32 = arith.constant 0 : i32
    %c0_i32_0 = arith.constant 0 : i32
    %c0_i32_1 = arith.constant 0 : i32
    return %c0_i32, %c0_i32_0 : i32, i32
  }
  func.func @transform_4(%arg0: i32) -> (i32, i32) {
    %c0_i32 = arith.constant 0 : i32
    %c0_i32_0 = arith.constant 0 : i32
    %c0_i32_1 = arith.constant 0 : i32
    return %c0_i32, %c0_i32_0 : i32, i32
  }
  func.func @transform_5(%arg0: i32) -> (i32, i32) {
    %c0_i32 = arith.constant 0 : i32
    %c0_i32_0 = arith.constant 0 : i32
    return %arg0, %c0_i32 : i32, i32
  }
}

</mosaic_0001>

<llo_original>
// kernel: dnn_forward.1
$region0: #{dnn_forward.1}
  #allocation0 [shape = 'u32[]', space=smem, size = 0x4, offset = 0x4, fixed_abs, tag = 'smem constant byte address 0x4 - core index']
  #allocation1 [shape = 'u32[144,128]{1,0:T(1,128)}', space=vmem, size = 0x12000, scoped, tag = 'internal scratch']
  %s0 = inlined_call_operand.vmem [shape: bf16[16,128], index: 0, kind: input, shape index: {}]
  %s1 = inlined_call_operand.hbm [shape: bf16[128,128], index: 1, kind: input, shape index: {}]
  %s2 = inlined_call_operand.hbm [shape: bf16[128,128], index: 2, kind: input, shape index: {}]
  %s3 = inlined_call_operand.vmem [shape: bf16[128,128], index: 3, kind: input, shape index: {}]
  %s4 = inlined_call_operand.vmem [shape: f32[3,128], index: 4, kind: input, shape index: {}]
  %s5 = inlined_call_operand.hbm [shape: f32[16,128], index: 5, kind: output, shape index: {}]
  %s6 = sld [smem:[#allocation0]]
  $region61: #{dnn_forward.1} parent=0
    _
  %s8 = ssub.s32 1, %s6
  %s9 = scalar_select 0, %s8, %s6
  $region1: #{dnn_forward.1} parent=0
    #allocation2 [shape = 'u8[32768]{0}', space=vmem, size = 0x8000, scoped, tag = 'input window, operand 1, single buffered']
    #allocation3 [shape = 's32[2]{0}', space=sflag, size = 0x8, scoped, tag = 'scoped memory for dnn_forward.1']
    #allocation4 [shape = 's32[2]{0}', space=sflag, size = 0x8, scoped, tag = 'scoped memory for dnn_forward.1']
    #allocation5 [shape = 'u8[32768]{0}', space=vmem, size = 0x8000, scoped, tag = 'input window, operand 2, single buffered']
    #allocation6 [shape = 's32[1]{0}', space=sflag, size = 0x4, scoped, tag = 'scoped memory for dnn_forward.1']
    #allocation7 [shape = 'u8[8192]{0}', space=vmem, size = 0x2000, scoped, tag = 'output window, operand 0']
    %10 = vsyncpa [#allocation3], 0
    %11 = vsyncpa [#allocation6], 0
    %12 = vsyncpa [#allocation4], 0
    %s13 = scalar_lea.sflag [#allocation4], 1
    %14 = vsyncpa %s13, 0
    loop: start=0, step=1, limit=4
    $region2: #{dnn_forward.1} parent=1 // loop_pre_header
      _
    $region3: #{dnn_forward.1} parent=1 // loop_header
      %s16 = sphi 0, %s20
      %p17 = scmp.ge.s32.totalorder %s16, 4
      %s26 = sphi 0, %s28
      %s29 = sphi 0, %s26
      %s30 = sphi 0, %s29
      %s46 = sphi 0, %s30
      %s50 = sphi 0, %s50
      %s52 = sphi 0, %s50
      %s53 = sphi 0, %s52
      %s67 = sphi 0, %s53
      %s71 = sphi 0, %s71
      %s73 = sphi 0, %s71
      %s74 = sphi 0, %s73
      %s88 = sphi 0, %s74
      %s92 = sphi 0, %s92
      %s94 = sphi 0, %s92
      %s95 = sphi 0, %s94
      %s109 = sphi 0, %s95
      %s113 = sphi 0, %s113
      %s115 = sphi 0, %s113
      %s116 = sphi 0, %s115
      %s130 = sphi 0, %s116
      %s136 = sphi 0, %s138
      %s139 = sphi 0, %s136
      %s140 = sphi 0, %s139
      %s156 = sphi 0, %s140
    $region4: #{dnn_forward.1} parent=1 // loop_header_branch
      %19 = sbr.rel (%p17) target = $region8
    $region5: #{dnn_forward.1} parent=1 // loop_body
      %s21 = ssub.s32 %s16, 1
      %s22 = ssub.s32 %s16, 2
      %s23 = sadd.s32 %s16, 1
      %s24 = ssub.s32 %s16, %s23
      %p25 = scmp.eq.s32.totalorder %s24, 0
      %s27 = sadd.s32 %s26, 1
      %s28 = scalar_select %p25, %s26, %s27
      %p31 = pneg %p25
      %p32 = scmp.eq.s32.totalorder %s16, 1
      %p33 = por %p31, %p32
      %p34 = scmp.ne.s32.totalorder %s26, %s29
      %p35 = scmp.eq.s32.totalorder %s16, 0
      %p36 = por %p34, %p35
      %p37 = scmp.ne.s32.totalorder %s26, %s29
      %p38 = scmp.eq.s32.totalorder %s21, 1
      %p39 = por %p37, %p38
      %p40 = scmp.ne.s32.totalorder %s29, %s30
      %p41 = scmp.eq.s32.totalorder %s21, 0
      %p42 = por %p40, %p41
      %p43 = scmp.ne.s32.totalorder %s29, %s30
      %p44 = scmp.eq.s32.totalorder %s22, 1
      %p45 = por %p43, %p44
      %p47 = scmp.ne.s32.totalorder %s30, %s46
      %p48 = scmp.eq.s32.totalorder %s22, 0
      %p49 = por %p47, %p48
      %s51 = sadd.s32 %s50, 1
      %p54 = scmp.eq.s32.totalorder %s16, 1
      %p55 = scmp.ne.s32.totalorder %s50, %s52
      %p56 = scmp.eq.s32.totalorder %s16, 0
      %p57 = por %p55, %p56
      %p58 = scmp.ne.s32.totalorder %s50, %s52
      %p59 = scmp.eq.s32.totalorder %s21, 1
      %p60 = por %p58, %p59
      %p61 = scmp.ne.s32.totalorder %s52, %s53
      %p62 = scmp.eq.s32.totalorder %s21, 0
      %p63 = por %p61, %p62
      %p64 = scmp.ne.s32.totalorder %s52, %s53
      %p65 = scmp.eq.s32.totalorder %s22, 1
      %p66 = por %p64, %p65
      %p68 = scmp.ne.s32.totalorder %s53, %s67
      %p69 = scmp.eq.s32.totalorder %s22, 0
      %p70 = por %p68, %p69
      %s72 = sadd.s32 %s71, 1
      %p75 = scmp.eq.s32.totalorder %s16, 1
      %p76 = scmp.ne.s32.totalorder %s71, %s73
      %p77 = scmp.eq.s32.totalorder %s16, 0
      %p78 = por %p76, %p77
      %p79 = scmp.ne.s32.totalorder %s71, %s73
      %p80 = scmp.eq.s32.totalorder %s21, 1
      %p81 = por %p79, %p80
      %p82 = scmp.ne.s32.totalorder %s73, %s74
      %p83 = scmp.eq.s32.totalorder %s21, 0
      %p84 = por %p82, %p83
      %p85 = scmp.ne.s32.totalorder %s73, %s74
      %p86 = scmp.eq.s32.totalorder %s22, 1
      %p87 = por %p85, %p86
      %p89 = scmp.ne.s32.totalorder %s74, %s88
      %p90 = scmp.eq.s32.totalorder %s22, 0
      %p91 = por %p89, %p90
      %s93 = sadd.s32 %s92, 1
      %p96 = scmp.eq.s32.totalorder %s16, 1
      %p97 = scmp.ne.s32.totalorder %s92, %s94
      %p98 = scmp.eq.s32.totalorder %s16, 0
      %p99 = por %p97, %p98
      %p100 = scmp.ne.s32.totalorder %s92, %s94
      %p101 = scmp.eq.s32.totalorder %s21, 1
      %p102 = por %p100, %p101
      %p103 = scmp.ne.s32.totalorder %s94, %s95
      %p104 = scmp.eq.s32.totalorder %s21, 0
      %p105 = por %p103, %p104
      %p106 = scmp.ne.s32.totalorder %s94, %s95
      %p107 = scmp.eq.s32.totalorder %s22, 1
      %p108 = por %p106, %p107
      %p110 = scmp.ne.s32.totalorder %s95, %s109
      %p111 = scmp.eq.s32.totalorder %s22, 0
      %p112 = por %p110, %p111
      %s114 = sadd.s32 %s113, 1
      %p117 = scmp.eq.s32.totalorder %s16, 1
      %p118 = scmp.ne.s32.totalorder %s113, %s115
      %p119 = scmp.eq.s32.totalorder %s16, 0
      %p120 = por %p118, %p119
      %p121 = scmp.ne.s32.totalorder %s113, %s115
      %p122 = scmp.eq.s32.totalorder %s21, 1
      %p123 = por %p121, %p122
      %p124 = scmp.ne.s32.totalorder %s115, %s116
      %p125 = scmp.eq.s32.totalorder %s21, 0
      %p126 = por %p124, %p125
      %p127 = scmp.ne.s32.totalorder %s115, %s116
      %p128 = scmp.eq.s32.totalorder %s22, 1
      %p129 = por %p127, %p128
      %p131 = scmp.ne.s32.totalorder %s116, %s130
      %p132 = scmp.eq.s32.totalorder %s22, 0
      %p133 = por %p131, %p132
      %s134 = ssub.s32 %s16, %s23
      %p135 = scmp.eq.s32.totalorder %s134, 0
      %s137 = sadd.s32 %s136, 1
      %s138 = scalar_select %p135, %s136, %s137
      %p141 = pneg %p135
      %p142 = scmp.eq.s32.totalorder %s16, 1
      %p143 = por %p141, %p142
      %p144 = scmp.ne.s32.totalorder %s136, %s139
      %p145 = scmp.eq.s32.totalorder %s16, 0
      %p146 = por %p144, %p145
      %p147 = scmp.ne.s32.totalorder %s136, %s139
      %p148 = scmp.eq.s32.totalorder %s21, 1
      %p149 = por %p147, %p148
      %p150 = scmp.ne.s32.totalorder %s139, %s140
      %p151 = scmp.eq.s32.totalorder %s21, 0
      %p152 = por %p150, %p151
      %p153 = scmp.ne.s32.totalorder %s139, %s140
      %p154 = scmp.eq.s32.totalorder %s22, 1
      %p155 = por %p153, %p154
      %p157 = scmp.ne.s32.totalorder %s140, %s156
      %p158 = scmp.eq.s32.totalorder %s22, 0
      %p159 = por %p157, %p158
      %p160 = scmp.le.s32.totalorder 1, %s16
      %p161 = scmp.lt.s32.totalorder %s16, 3
      %p162 = pnand %p160, %p161
      %p163 = pneg %p162
      // Predicated region
      $region9: #{dnn_forward.1} parent=5 // pred_check
        _
      $region10: #{dnn_forward.1} parent=5 // pred_check_branch
        %165 = sbr.rel (%p162) target = $region12
      $region11: #{dnn_forward.1} parent=5 // pred_region
        %s166 = ssub.s32 %s16, 1
        // Predicated region
        $region13: #{dnn_forward.1} parent=11 // pred_check
          %p167 = pneg %p63
        $region14: #{dnn_forward.1} parent=11 // pred_check_branch
          %169 = sbr.rel (%p167) target = $region16
        $region15: #{dnn_forward.1} parent=11 // pred_region
          %s171 = ssub.s32 1024, 1024
          %172 = vsyncadd [#allocation3], %s171
          %s173 = sshll.u32 [#allocation2], 4
          %s174 = int_to_ptr.vmem [resolvable:$true] %s173
          %179 = dma.hbm_to_vmem [thread:$0]  %s1, 1024, %s174, [#allocation3], 64, 64, 4
        $region16: #{dnn_forward.1} parent=11 // pred_fallthru
          _
        // Predicated region
        $region17: #{dnn_forward.1} parent=11 // pred_check
          %p180 = pneg %p84
        $region18: #{dnn_forward.1} parent=11 // pred_check_branch
          %182 = sbr.rel (%p180) target = $region20
        $region19: #{dnn_forward.1} parent=11 // pred_region
          %s184 = ssub.s32 1024, 1024
          %185 = vsyncadd [#allocation6], %s184
          %s186 = sshll.u32 [#allocation5], 4
          %s187 = int_to_ptr.vmem [resolvable:$true] %s186
          %192 = dma.hbm_to_vmem [thread:$0]  %s2, 1024, %s187, [#allocation6], 64, 64, 4
        $region20: #{dnn_forward.1} parent=11 // pred_fallthru
          _
        // Predicated region
        $region21: #{dnn_forward.1} parent=11 // pred_check
          %p193 = pneg %p105
        $region22: #{dnn_forward.1} parent=11 // pred_check_branch
          %195 = sbr.rel (%p193) target = $region24
        $region23: #{dnn_forward.1} parent=11 // pred_region
          _
        $region24: #{dnn_forward.1} parent=11 // pred_fallthru
          _
        // Predicated region
        $region25: #{dnn_forward.1} parent=11 // pred_check
          %p196 = pneg %p126
        $region26: #{dnn_forward.1} parent=11 // pred_check_branch
          %198 = sbr.rel (%p196) target = $region28
        $region27: #{dnn_forward.1} parent=11 // pred_region
          _
        $region28: #{dnn_forward.1} parent=11 // pred_fallthru
          _
      $region12: #{dnn_forward.1} parent=5 // pred_fallthru
        _
      %p199 = scmp.lt.s32.totalorder %s16, 2
      // Predicated region
      $region29: #{dnn_forward.1} parent=5 // pred_check
        %p200 = pneg %p199
      $region30: #{dnn_forward.1} parent=5 // pred_check_branch
        %202 = sbr.rel (%p200) target = $region32
      $region31: #{dnn_forward.1} parent=5 // pred_region
        // Predicated region
        $region33: #{dnn_forward.1} parent=31 // pred_check
          %p203 = pneg %p36
        $region34: #{dnn_forward.1} parent=31 // pred_check_branch
          %205 = sbr.rel (%p203) target = $region36
        $region35: #{dnn_forward.1} parent=31 // pred_region
          %p206 = scmp.lt.s32.totalorder %s16, 1
          %s207 = scalar_select %p206, %s16, 1
          %s208 = smul.addr %s207, 4
          %s209 = scalar_lea.vmem %s0, %s208
        $region36: #{dnn_forward.1} parent=31 // pred_fallthru
          _
      $region32: #{dnn_forward.1} parent=5 // pred_fallthru
        _
      %p210 = scmp.le.s32.totalorder 1, %s16
      %p211 = scmp.lt.s32.totalorder %s16, 3
      %p212 = pnand %p210, %p211
      %p213 = pneg %p212
      // Predicated region
      $region37: #{dnn_forward.1} parent=5 // pred_check
        _
      $region38: #{dnn_forward.1} parent=5 // pred_check_branch
        %215 = sbr.rel (%p212) target = $region40
      $region39: #{dnn_forward.1} parent=5 // pred_region
        %s216 = ssub.s32 %s16, 1
        // Predicated region
        $region41: #{dnn_forward.1} parent=39 // pred_check
          %p217 = pneg %p63
        $region42: #{dnn_forward.1} parent=39 // pred_check_branch
          %219 = sbr.rel (%p217) target = $region44
        $region43: #{dnn_forward.1} parent=39 // pred_region
          %220 = dma.done [#allocation3], 1024
        $region44: #{dnn_forward.1} parent=39 // pred_fallthru
          _
        // Predicated region
        $region45: #{dnn_forward.1} parent=39 // pred_check
          %p221 = pneg %p84
        $region46: #{dnn_forward.1} parent=39 // pred_check_branch
          %223 = sbr.rel (%p221) target = $region48
        $region47: #{dnn_forward.1} parent=39 // pred_region
          %224 = dma.done [#allocation6], 1024
        $region48: #{dnn_forward.1} parent=39 // pred_fallthru
          _
        %p225 = scmp.lt.s32.totalorder %s21, 1
        %s226 = scalar_select %p225, %s21, 1
        %s227 = smul.addr %s226, 4
        %s228 = scalar_lea.vmem %s0, %s227
        %p229 = pneg %p42
        %p230 = pneg %p39
        %p231 = pneg %p63
        %p232 = pneg %p60
        %p233 = pneg %p84
        %p234 = pneg %p81
        %p235 = pneg %p105
        %p236 = pneg %p102
        %p237 = pneg %p126
        %p238 = pneg %p123
        %p239 = pneg %p152
        %p240 = pneg %p149
        %s241 = sand.u32 %s139, 1
        %s242 = scalar_lea.sflag [#allocation4], %s241
        %s243 = sand.u32 %s139, 1
        %s244 = smul.addr %s243, 8
        %s245 = scalar_lea.vmem [#allocation7], %s244
        %p246 = scmp.lt.s32.totalorder %s21, 1
        %s247 = scalar_select %p246, %s21, 1
        %s248 = smul.addr %s247, 4
        %s249 = scalar_lea.vmem %s0, %s248
        %v251 = vld [vmem:[%s249] sm:$0xf]
        %v252 = vld [vmem:[#allocation2] sm:$0xf]
        %v253 = vld [vmem:[#allocation2 + $0x4] sm:$0xf]
        %v254 = vld [vmem:[#allocation2 + $0x8] sm:$0xf]
        %v255 = vld [vmem:[#allocation2 + $0xc] sm:$0xf]
        %v256 = vld [vmem:[#allocation2 + $0x10] sm:$0xf]
        %v257 = vld [vmem:[#allocation2 + $0x14] sm:$0xf]
        %v258 = vld [vmem:[#allocation2 + $0x18] sm:$0xf]
        %v259 = vld [vmem:[#allocation2 + $0x1c] sm:$0xf]
        %v260 = vld [vmem:[#allocation2 + $0x20] sm:$0xf]
        %v261 = vld [vmem:[#allocation2 + $0x24] sm:$0xf]
        %v262 = vld [vmem:[#allocation2 + $0x28] sm:$0xf]
        %v263 = vld [vmem:[#allocation2 + $0x2c] sm:$0xf]
        %v264 = vld [vmem:[#allocation2 + $0x30] sm:$0xf]
        %v265 = vld [vmem:[#allocation2 + $0x34] sm:$0xf]
        %v266 = vld [vmem:[#allocation2 + $0x38] sm:$0xf]
        %v267 = vld [vmem:[#allocation2 + $0x3c] sm:$0xf]
        %v268 = vld [vmem:[%s4] sm:$0x1]
        %v269 = vlaneseq
        %v270 = vshrl.u32 %v269, 7
        %v271 = vsub.s32 0, %v270
        %v272 = vrot.slane %v268, %v271
        %v289 = vunpack.c.l.b16 %v252
        %v290 = vunpack.c.l.b16 %v253
        %v291 = vunpack.c.l.b16 %v254
        %v292 = vunpack.c.l.b16 %v255
        %v293 = vunpack.c.l.b16 %v256
        %v294 = vunpack.c.l.b16 %v257
        %v295 = vunpack.c.l.b16 %v258
        %v296 = vunpack.c.l.b16 %v259
        %v297 = vunpack.c.l.b16 %v260
        %v298 = vunpack.c.l.b16 %v261
        %v299 = vunpack.c.l.b16 %v262
        %v300 = vunpack.c.l.b16 %v263
        %v301 = vunpack.c.l.b16 %v264
        %v302 = vunpack.c.l.b16 %v265
        %v303 = vunpack.c.l.b16 %v266
        %v304 = vunpack.c.l.b16 %v267
        %v305 = vpack.c.b16 %v290, %v289
        %v306 = vpack.c.b16 %v292, %v291
        %v307 = vpack.c.b16 %v294, %v293
        %v308 = vpack.c.b16 %v296, %v295
        %v309 = vpack.c.b16 %v298, %v297
        %v310 = vpack.c.b16 %v300, %v299
        %v311 = vpack.c.b16 %v302, %v301
        %v312 = vpack.c.b16 %v304, %v303
        %321 = vmatprep.subr.bf16.mxu0 0
        %322 = vmatpush1.bf16.msra.mxu0 %v312
        %323 = vmatprep.subr.bf16.mxu0 0
        %324 = vmatpush1.bf16.msra.mxu0 %v311
        %325 = vmatprep.subr.bf16.mxu0 0
        %326 = vmatpush1.bf16.msra.mxu0 %v310
        %327 = vmatprep.subr.bf16.mxu0 0
        %328 = vmatpush1.bf16.msra.mxu0 %v309
        %329 = vmatprep.subr.bf16.mxu0 0
        %330 = vmatpush1.bf16.msra.mxu0 %v308
        %331 = vmatprep.subr.bf16.mxu0 0
        %332 = vmatpush1.bf16.msra.mxu0 %v307
        %333 = vmatprep.subr.bf16.mxu0 0
        %334 = vmatpush1.bf16.msra.mxu0 %v306
        %335 = vmatprep.subr.bf16.mxu0 0
        %336 = vmatpush1.bf16.msra.mxu0 %v305
        %337 = vmatprep.subr.bf16.mxu0 0
        %338 = vmatpush2.bf16.msra.mxu0 0
        %339 = vmatprep.subr.bf16.mxu0 0
        %340 = vmatpush2.bf16.msra.mxu0 0
        %341 = vmatprep.subr.bf16.mxu0 0
        %342 = vmatpush2.bf16.msra.mxu0 0
        %343 = vmatprep.subr.bf16.mxu0 0
        %344 = vmatpush2.bf16.msra.mxu0 0
        %345 = vmatprep.subr.bf16.mxu0 0
        %346 = vmatpush2.bf16.msra.mxu0 0
        %347 = vmatprep.subr.bf16.mxu0 0
        %348 = vmatpush2.bf16.msra.mxu0 0
        %349 = vmatprep.subr.bf16.mxu0 0
        %350 = vmatpush2.bf16.msra.mxu0 0
        %351 = vmatprep.subr.bf16.mxu0 0
        %352 = vmatpush2.bf16.msra.mxu0 0
        %353 = vmatprep.mubr.bf16.mxu0 0
        %354 = vmatmul.mubr.bf16.gmra.mxu0 %v251
        %v355 = vpop.f32.mrf.mxu0
        %v356 = vadd.f32 %v272, %v355
        %v357 = vpop.f32.mrf.mxu0
        %v358 = vpop.f32.mrf.mxu0
        %v359 = vpop.f32.mrf.mxu0
        %360 = vdwg.mxu0
        %v361 = vmax.f32 %v356, 0.0
        %v362 = vpack.c.bf16 %v361, %v361
        %v363 = vld [vmem:[#allocation5] sm:$0xf]
        %v364 = vld [vmem:[#allocation5 + $0x4] sm:$0xf]
        %v365 = vld [vmem:[#allocation5 + $0x8] sm:$0xf]
        %v366 = vld [vmem:[#allocation5 + $0xc] sm:$0xf]
        %v367 = vld [vmem:[#allocation5 + $0x10] sm:$0xf]
        %v368 = vld [vmem:[#allocation5 + $0x14] sm:$0xf]
        %v369 = vld [vmem:[#allocation5 + $0x18] sm:$0xf]
        %v370 = vld [vmem:[#allocation5 + $0x1c] sm:$0xf]
        %v371 = vld [vmem:[#allocation5 + $0x20] sm:$0xf]
        %v372 = vld [vmem:[#allocation5 + $0x24] sm:$0xf]
        %v373 = vld [vmem:[#allocation5 + $0x28] sm:$0xf]
        %v374 = vld [vmem:[#allocation5 + $0x2c] sm:$0xf]
        %v375 = vld [vmem:[#allocation5 + $0x30] sm:$0xf]
        %v376 = vld [vmem:[#allocation5 + $0x34] sm:$0xf]
        %v377 = vld [vmem:[#allocation5 + $0x38] sm:$0xf]
        %v378 = vld [vmem:[#allocation5 + $0x3c] sm:$0xf]
        %v379 = vld [vmem:[%s4 + $0x1] sm:$0x1]
        %v380 = vlaneseq
        %v381 = vshrl.u32 %v380, 7
        %v382 = vsub.s32 0, %v381
        %v383 = vrot.slane %v379, %v382
        %v400 = vunpack.c.l.b16 %v363
        %v401 = vunpack.c.l.b16 %v364
        %v402 = vunpack.c.l.b16 %v365
        %v403 = vunpack.c.l.b16 %v366
        %v404 = vunpack.c.l.b16 %v367
        %v405 = vunpack.c.l.b16 %v368
        %v406 = vunpack.c.l.b16 %v369
        %v407 = vunpack.c.l.b16 %v370
        %v408 = vunpack.c.l.b16 %v371
        %v409 = vunpack.c.l.b16 %v372
        %v410 = vunpack.c.l.b16 %v373
        %v411 = vunpack.c.l.b16 %v374
        %v412 = vunpack.c.l.b16 %v375
        %v413 = vunpack.c.l.b16 %v376
        %v414 = vunpack.c.l.b16 %v377
        %v415 = vunpack.c.l.b16 %v378
        %v416 = vpack.c.b16 %v401, %v400
        %v417 = vpack.c.b16 %v403, %v402
        %v418 = vpack.c.b16 %v405, %v404
        %v419 = vpack.c.b16 %v407, %v406
        %v420 = vpack.c.b16 %v409, %v408
        %v421 = vpack.c.b16 %v411, %v410
        %v422 = vpack.c.b16 %v413, %v412
        %v423 = vpack.c.b16 %v415, %v414
        %432 = vmatprep.subr.bf16.mxu0 0
        %433 = vmatpush1.bf16.msra.mxu0 %v423
        %434 = vmatprep.subr.bf16.mxu0 0
        %435 = vmatpush1.bf16.msra.mxu0 %v422
        %436 = vmatprep.subr.bf16.mxu0 0
        %437 = vmatpush1.bf16.msra.mxu0 %v421
        %438 = vmatprep.subr.bf16.mxu0 0
        %439 = vmatpush1.bf16.msra.mxu0 %v420
        %440 = vmatprep.subr.bf16.mxu0 0
        %441 = vmatpush1.bf16.msra.mxu0 %v419
        %442 = vmatprep.subr.bf16.mxu0 0
        %443 = vmatpush1.bf16.msra.mxu0 %v418
        %444 = vmatprep.subr.bf16.mxu0 0
        %445 = vmatpush1.bf16.msra.mxu0 %v417
        %446 = vmatprep.subr.bf16.mxu0 0
        %447 = vmatpush1.bf16.msra.mxu0 %v416
        %448 = vmatprep.subr.bf16.mxu0 0
        %449 = vmatpush2.bf16.msra.mxu0 0
        %450 = vmatprep.subr.bf16.mxu0 0
        %451 = vmatpush2.bf16.msra.mxu0 0
        %452 = vmatprep.subr.bf16.mxu0 0
        %453 = vmatpush2.bf16.msra.mxu0 0
        %454 = vmatprep.subr.bf16.mxu0 0
        %455 = vmatpush2.bf16.msra.mxu0 0
        %456 = vmatprep.subr.bf16.mxu0 0
        %457 = vmatpush2.bf16.msra.mxu0 0
        %458 = vmatprep.subr.bf16.mxu0 0
        %459 = vmatpush2.bf16.msra.mxu0 0
        %460 = vmatprep.subr.bf16.mxu0 0
        %461 = vmatpush2.bf16.msra.mxu0 0
        %462 = vmatprep.subr.bf16.mxu0 0
        %463 = vmatpush2.bf16.msra.mxu0 0
        %464 = vmatprep.mubr.bf16.mxu0 0
        %465 = vmatmul.mubr.bf16.gmra.mxu0 %v362
        %v466 = vpop.f32.mrf.mxu0
        %v467 = vadd.f32 %v383, %v466
        %v468 = vpop.f32.mrf.mxu0
        %v469 = vpop.f32.mrf.mxu0
        %v470 = vpop.f32.mrf.mxu0
        %471 = vdwg.mxu0
        %v472 = vmax.f32 %v467, 0.0
        %v473 = vpack.c.bf16 %v472, %v472
        %v474 = vld [vmem:[%s3] sm:$0xf]
        %v475 = vld [vmem:[%s3 + $0x4] sm:$0xf]
        %v476 = vld [vmem:[%s3 + $0x8] sm:$0xf]
        %v477 = vld [vmem:[%s3 + $0xc] sm:$0xf]
        %v478 = vld [vmem:[%s3 + $0x10] sm:$0xf]
        %v479 = vld [vmem:[%s3 + $0x14] sm:$0xf]
        %v480 = vld [vmem:[%s3 + $0x18] sm:$0xf]
        %v481 = vld [vmem:[%s3 + $0x1c] sm:$0xf]
        %v482 = vld [vmem:[%s3 + $0x20] sm:$0xf]
        %v483 = vld [vmem:[%s3 + $0x24] sm:$0xf]
        %v484 = vld [vmem:[%s3 + $0x28] sm:$0xf]
        %v485 = vld [vmem:[%s3 + $0x2c] sm:$0xf]
        %v486 = vld [vmem:[%s3 + $0x30] sm:$0xf]
        %v487 = vld [vmem:[%s3 + $0x34] sm:$0xf]
        %v488 = vld [vmem:[%s3 + $0x38] sm:$0xf]
        %v489 = vld [vmem:[%s3 + $0x3c] sm:$0xf]
        %v490 = vld [vmem:[%s4 + $0x2] sm:$0x1]
        %v491 = vlaneseq
        %v492 = vshrl.u32 %v491, 7
        %v493 = vsub.s32 0, %v492
        %v494 = vrot.slane %v490, %v493
        %v511 = vunpack.c.l.b16 %v474
        %v512 = vunpack.c.l.b16 %v475
        %v513 = vunpack.c.l.b16 %v476
        %v514 = vunpack.c.l.b16 %v477
        %v515 = vunpack.c.l.b16 %v478
        %v516 = vunpack.c.l.b16 %v479
        %v517 = vunpack.c.l.b16 %v480
        %v518 = vunpack.c.l.b16 %v481
        %v519 = vunpack.c.l.b16 %v482
        %v520 = vunpack.c.l.b16 %v483
        %v521 = vunpack.c.l.b16 %v484
        %v522 = vunpack.c.l.b16 %v485
        %v523 = vunpack.c.l.b16 %v486
        %v524 = vunpack.c.l.b16 %v487
        %v525 = vunpack.c.l.b16 %v488
        %v526 = vunpack.c.l.b16 %v489
        %v527 = vpack.c.b16 %v512, %v511
        %v528 = vpack.c.b16 %v514, %v513
        %v529 = vpack.c.b16 %v516, %v515
        %v530 = vpack.c.b16 %v518, %v517
        %v531 = vpack.c.b16 %v520, %v519
        %v532 = vpack.c.b16 %v522, %v521
        %v533 = vpack.c.b16 %v524, %v523
        %v534 = vpack.c.b16 %v526, %v525
        %543 = vmatprep.subr.bf16.mxu0 0
        %544 = vmatpush1.bf16.msra.mxu0 %v534
        %545 = vmatprep.subr.bf16.mxu0 0
        %546 = vmatpush1.bf16.msra.mxu0 %v533
        %547 = vmatprep.subr.bf16.mxu0 0
        %548 = vmatpush1.bf16.msra.mxu0 %v532
        %549 = vmatprep.subr.bf16.mxu0 0
        %550 = vmatpush1.bf16.msra.mxu0 %v531
        %551 = vmatprep.subr.bf16.mxu0 0
        %552 = vmatpush1.bf16.msra.mxu0 %v530
        %553 = vmatprep.subr.bf16.mxu0 0
        %554 = vmatpush1.bf16.msra.mxu0 %v529
        %555 = vmatprep.subr.bf16.mxu0 0
        %556 = vmatpush1.bf16.msra.mxu0 %v528
        %557 = vmatprep.subr.bf16.mxu0 0
        %558 = vmatpush1.bf16.msra.mxu0 %v527
        %559 = vmatprep.subr.bf16.mxu0 0
        %560 = vmatpush2.bf16.msra.mxu0 0
        %561 = vmatprep.subr.bf16.mxu0 0
        %562 = vmatpush2.bf16.msra.mxu0 0
        %563 = vmatprep.subr.bf16.mxu0 0
        %564 = vmatpush2.bf16.msra.mxu0 0
        %565 = vmatprep.subr.bf16.mxu0 0
        %566 = vmatpush2.bf16.msra.mxu0 0
        %567 = vmatprep.subr.bf16.mxu0 0
        %568 = vmatpush2.bf16.msra.mxu0 0
        %569 = vmatprep.subr.bf16.mxu0 0
        %570 = vmatpush2.bf16.msra.mxu0 0
        %571 = vmatprep.subr.bf16.mxu0 0
        %572 = vmatpush2.bf16.msra.mxu0 0
        %573 = vmatprep.subr.bf16.mxu0 0
        %574 = vmatpush2.bf16.msra.mxu0 0
        %575 = vmatprep.mubr.bf16.mxu0 0
        %576 = vmatmul.mubr.bf16.gmra.mxu0 %v473
        %v577 = vpop.f32.mrf.mxu0
        %v578 = vadd.f32 %v494, %v577
        %v579 = vpop.f32.mrf.mxu0
        %v580 = vpop.f32.mrf.mxu0
        %v581 = vpop.f32.mrf.mxu0
        %582 = vdwg.mxu0
        %583 = vst [vmem:[%s245] sm:$0xff] %v578
        %s584 = sand.u32 %s139, 1
        %s585 = scalar_lea.sflag [#allocation4], %s584
        %s586 = sand.u32 %s139, 1
        %s587 = smul.addr %s586, 8
        %s588 = scalar_lea.vmem [#allocation7], %s587
        // Predicated region
        $region49: #{dnn_forward.1} parent=39 // pred_check
          %p589 = pneg %p149
        $region50: #{dnn_forward.1} parent=39 // pred_check_branch
          %591 = sbr.rel (%p589) target = $region52
        $region51: #{dnn_forward.1} parent=39 // pred_region
          %s593 = ssub.s32 128, 128
          %594 = vsyncadd %s585, %s593
          %s595 = smul.addr %s21, 128
          %s596 = scalar_lea.hbm %s5, %s595
          %s598 = sshll.u32 %s588, 4
          %s599 = int_to_ptr.vmem [resolvable:$true] %s598
          %601 = dma.vmem_to_hbm [thread:$0]  %s599, 128, %s596, %s585
        $region52: #{dnn_forward.1} parent=39 // pred_fallthru
          _
      $region40: #{dnn_forward.1} parent=5 // pred_fallthru
        _
      %p602 = scmp.le.s32.totalorder 2, %s16
      // Predicated region
      $region53: #{dnn_forward.1} parent=5 // pred_check
        %p603 = pneg %p602
      $region54: #{dnn_forward.1} parent=5 // pred_check_branch
        %605 = sbr.rel (%p603) target = $region56
      $region55: #{dnn_forward.1} parent=5 // pred_region
        %s606 = ssub.s32 %s16, 2
        // Predicated region
        $region57: #{dnn_forward.1} parent=55 // pred_check
          %p607 = pneg %p155
        $region58: #{dnn_forward.1} parent=55 // pred_check_branch
          %609 = sbr.rel (%p607) target = $region60
        $region59: #{dnn_forward.1} parent=55 // pred_region
          %s610 = sand.u32 %s140, 1
          %s611 = scalar_lea.sflag [#allocation4], %s610
          %s612 = sand.u32 %s140, 1
          %s613 = smul.addr %s612, 8
          %s614 = scalar_lea.vmem [#allocation7], %s613
          %615 = dma.done %s611, 128
        $region60: #{dnn_forward.1} parent=55 // pred_fallthru
          _
      $region56: #{dnn_forward.1} parent=5 // pred_fallthru
        _
    $region6: #{dnn_forward.1} parent=1 // loop_footer
      %s20 = sadd.s32 1, %s16
    $region7: #{dnn_forward.1} parent=1 // loop_footer_branch
      %15 = sbr.rel target = $region3
    $region8: #{dnn_forward.1} parent=1 // loop_exit
      _
    %616 = vsyncpa [#allocation3], 1
    %s617 = scalar_lea.sflag [#allocation3], 1
    %618 = vsyncpa %s617, 1
    %619 = vsyncpa [#allocation6], 1
    %620 = vsyncpa [#allocation4], 1
    %s621 = scalar_lea.sflag [#allocation4], 1
    %622 = vsyncpa %s621, 1

// kernel: dnn_forward.1
$region0: #{dnn_forward.1}
  #allocation0 [shape = 'u32[]', space=smem, size = 0x4, offset = 0x4, fixed_abs, tag = 'smem constant byte address 0x4 - core index']
  #allocation1 [shape = 'u32[144,128]{1,0:T(1,128)}', space=vmem, size = 0x12000, scoped, tag = 'internal scratch']
  %s0 = inlined_call_operand.vmem [shape: bf16[16,128], index: 0, kind: input, shape index: {}]
  %s1 = inlined_call_operand.hbm [shape: bf16[128,128], index: 1, kind: input, shape index: {}]
  %s2 = inlined_call_operand.hbm [shape: bf16[128,128], index: 2, kind: input, shape index: {}]
  %s3 = inlined_call_operand.vmem [shape: bf16[128,128], index: 3, kind: input, shape index: {}]
  %s4 = inlined_call_operand.vmem [shape: f32[3,128], index: 4, kind: input, shape index: {}]
  %s5 = inlined_call_operand.hbm [shape: f32[16,128], index: 5, kind: output, shape index: {}]
  %s6 = sld [smem:[#allocation0]]
  $region61: #{dnn_forward.1} parent=0
    _
  %s8 = ssub.s32 1, %s6
  %s9 = scalar_select 0, %s8, %s6
  $region1: #{dnn_forward.1} parent=0
    #allocation2 [shape = 'u8[32768]{0}', space=vmem, size = 0x8000, scoped, tag = 'input window, operand 1, single buffered']
    #allocation3 [shape = 's32[2]{0}', space=sflag, size = 0x8, scoped, tag = 'scoped memory for dnn_forward.1']
    #allocation4 [shape = 's32[2]{0}', space=sflag, size = 0x8, scoped, tag = 'scoped memory for dnn_forward.1']
    #allocation5 [shape = 'u8[32768]{0}', space=vmem, size = 0x8000, scoped, tag = 'input window, operand 2, single buffered']
    #allocation6 [shape = 's32[1]{0}', space=sflag, size = 0x4, scoped, tag = 'scoped memory for dnn_forward.1']
    #allocation7 [shape = 'u8[8192]{0}', space=vmem, size = 0x2000, scoped, tag = 'output window, operand 0']
    %10 = vsyncpa [#allocation3], 0
    %11 = vsyncpa [#allocation6], 0
    %12 = vsyncpa [#allocation4], 0
    %s13 = scalar_lea.sflag [#allocation4], 1
    %14 = vsyncpa %s13, 0
    loop: start=0, step=1, limit=4
    $region2: #{dnn_forward.1} parent=1 // loop_pre_header
      _
    $region3: #{dnn_forward.1} parent=1 // loop_header
      %s16 = sphi 0, %s20
      %p17 = scmp.ge.s32.totalorder %s16, 4
      %s26 = sphi 0, %s28
      %s29 = sphi 0, %s26
      %s30 = sphi 0, %s29
      %s46 = sphi 0, %s30
      %s50 = sphi 0, %s50
      %s52 = sphi 0, %s50
      %s53 = sphi 0, %s52
      %s67 = sphi 0, %s53
      %s71 = sphi 0, %s71
      %s73 = sphi 0, %s71
      %s74 = sphi 0, %s73
      %s88 = sphi 0, %s74
      %s92 = sphi 0, %s92
      %s94 = sphi 0, %s92
      %s95 = sphi 0, %s94
      %s109 = sphi 0, %s95
      %s113 = sphi 0, %s113
      %s115 = sphi 0, %s113
      %s116 = sphi 0, %s115
      %s130 = sphi 0, %s116
      %s136 = sphi 0, %s138
      %s139 = sphi 0, %s136
      %s140 = sphi 0, %s139
      %s156 = sphi 0, %s140
    $region4: #{dnn_forward.1} parent=1 // loop_header_branch
      %19 = sbr.rel (%p17) target = $region8
    $region5: #{dnn_forward.1} parent=1 // loop_body
      %s21 = ssub.s32 %s16, 1
      %s22 = ssub.s32 %s16, 2
      %s23 = sadd.s32 %s16, 1
      %s24 = ssub.s32 %s16, %s23
      %p25 = scmp.eq.s32.totalorder %s24, 0
      %s27 = sadd.s32 %s26, 1
      %s28 = scalar_select %p25, %s26, %s27
      %p31 = pneg %p25
      %p32 = scmp.eq.s32.totalorder %s16, 1
      %p33 = por %p31, %p32
      %p34 = scmp.ne.s32.totalorder %s26, %s29
      %p35 = scmp.eq.s32.totalorder %s16, 0
      %p36 = por %p34, %p35
      %p37 = scmp.ne.s32.totalorder %s26, %s29
      %p38 = scmp.eq.s32.totalorder %s21, 1
      %p39 = por %p37, %p38
      %p40 = scmp.ne.s32.totalorder %s29, %s30
      %p41 = scmp.eq.s32.totalorder %s21, 0
      %p42 = por %p40, %p41
      %p43 = scmp.ne.s32.totalorder %s29, %s30
      %p44 = scmp.eq.s32.totalorder %s22, 1
      %p45 = por %p43, %p44
      %p47 = scmp.ne.s32.totalorder %s30, %s46
      %p48 = scmp.eq.s32.totalorder %s22, 0
      %p49 = por %p47, %p48
      %s51 = sadd.s32 %s50, 1
      %p54 = scmp.eq.s32.totalorder %s16, 1
      %p55 = scmp.ne.s32.totalorder %s50, %s52
      %p56 = scmp.eq.s32.totalorder %s16, 0
      %p57 = por %p55, %p56
      %p58 = scmp.ne.s32.totalorder %s50, %s52
      %p59 = scmp.eq.s32.totalorder %s21, 1
      %p60 = por %p58, %p59
      %p61 = scmp.ne.s32.totalorder %s52, %s53
      %p62 = scmp.eq.s32.totalorder %s21, 0
      %p63 = por %p61, %p62
      %p64 = scmp.ne.s32.totalorder %s52, %s53
      %p65 = scmp.eq.s32.totalorder %s22, 1
      %p66 = por %p64, %p65
      %p68 = scmp.ne.s32.totalorder %s53, %s67
      %p69 = scmp.eq.s32.totalorder %s22, 0
      %p70 = por %p68, %p69
      %s72 = sadd.s32 %s71, 1
      %p75 = scmp.eq.s32.totalorder %s16, 1
      %p76 = scmp.ne.s32.totalorder %s71, %s73
      %p77 = scmp.eq.s32.totalorder %s16, 0
      %p78 = por %p76, %p77
      %p79 = scmp.ne.s32.totalorder %s71, %s73
      %p80 = scmp.eq.s32.totalorder %s21, 1
      %p81 = por %p79, %p80
      %p82 = scmp.ne.s32.totalorder %s73, %s74
      %p83 = scmp.eq.s32.totalorder %s21, 0
      %p84 = por %p82, %p83
      %p85 = scmp.ne.s32.totalorder %s73, %s74
      %p86 = scmp.eq.s32.totalorder %s22, 1
      %p87 = por %p85, %p86
      %p89 = scmp.ne.s32.totalorder %s74, %s88
      %p90 = scmp.eq.s32.totalorder %s22, 0
      %p91 = por %p89, %p90
      %s93 = sadd.s32 %s92, 1
      %p96 = scmp.eq.s32.totalorder %s16, 1
      %p97 = scmp.ne.s32.totalorder %s92, %s94
      %p98 = scmp.eq.s32.totalorder %s16, 0
      %p99 = por %p97, %p98
      %p100 = scmp.ne.s32.totalorder %s92, %s94
      %p101 = scmp.eq.s32.totalorder %s21, 1
      %p102 = por %p100, %p101
      %p103 = scmp.ne.s32.totalorder %s94, %s95
      %p104 = scmp.eq.s32.totalorder %s21, 0
      %p105 = por %p103, %p104
      %p106 = scmp.ne.s32.totalorder %s94, %s95
      %p107 = scmp.eq.s32.totalorder %s22, 1
      %p108 = por %p106, %p107
      %p110 = scmp.ne.s32.totalorder %s95, %s109
      %p111 = scmp.eq.s32.totalorder %s22, 0
      %p112 = por %p110, %p111
      %s114 = sadd.s32 %s113, 1
      %p117 = scmp.eq.s32.totalorder %s16, 1
      %p118 = scmp.ne.s32.totalorder %s113, %s115
      %p119 = scmp.eq.s32.totalorder %s16, 0
      %p120 = por %p118, %p119
      %p121 = scmp.ne.s32.totalorder %s113, %s115
      %p122 = scmp.eq.s32.totalorder %s21, 1
      %p123 = por %p121, %p122
      %p124 = scmp.ne.s32.totalorder %s115, %s116
      %p125 = scmp.eq.s32.totalorder %s21, 0
      %p126 = por %p124, %p125
      %p127 = scmp.ne.s32.totalorder %s115, %s116
      %p128 = scmp.eq.s32.totalorder %s22, 1
      %p129 = por %p127, %p128
      %p131 = scmp.ne.s32.totalorder %s116, %s130
      %p132 = scmp.eq.s32.totalorder %s22, 0
      %p133 = por %p131, %p132
      %s134 = ssub.s32 %s16, %s23
      %p135 = scmp.eq.s32.totalorder %s134, 0
      %s137 = sadd.s32 %s136, 1
      %s138 = scalar_select %p135, %s136, %s137
      %p141 = pneg %p135
      %p142 = scmp.eq.s32.totalorder %s16, 1
      %p143 = por %p141, %p142
      %p144 = scmp.ne.s32.totalorder %s136, %s139
      %p145 = scmp.eq.s32.totalorder %s16, 0
      %p146 = por %p144, %p145
      %p147 = scmp.ne.s32.totalorder %s136, %s139
      %p148 = scmp.eq.s32.totalorder %s21, 1
      %p149 = por %p147, %p148
      %p150 = scmp.ne.s32.totalorder %s139, %s140
      %p151 = scmp.eq.s32.totalorder %s21, 0
      %p152 = por %p150, %p151
      %p153 = scmp.ne.s32.totalorder %s139, %s140
      %p154 = scmp.eq.s32.totalorder %s22, 1
      %p155 = por %p153, %p154
      %p157 = scmp.ne.s32.totalorder %s140, %s156
      %p158 = scmp.eq.s32.totalorder %s22, 0
      %p159 = por %p157, %p158
      %p160 = scmp.le.s32.totalorder 1, %s16
      %p161 = scmp.lt.s32.totalorder %s16, 3
      %p162 = pnand %p160, %p161
      %p163 = pneg %p162
      // Predicated region
      $region9: #{dnn_forward.1} parent=5 // pred_check
        _
      $region10: #{dnn_forward.1} parent=5 // pred_check_branch
        %165 = sbr.rel (%p162) target = $region12
      $region11: #{dnn_forward.1} parent=5 // pred_region
        %s166 = ssub.s32 %s16, 1
        // Predicated region
        $region13: #{dnn_forward.1} parent=11 // pred_check
          %p167 = pneg %p63
        $region14: #{dnn_forward.1} parent=11 // pred_check_branch
          %169 = sbr.rel (%p167) target = $region16
        $region15: #{dnn_forward.1} parent=11 // pred_region
          %s171 = ssub.s32 1024, 1024
          %172 = vsyncadd [#allocation3], %s171
          %s173 = sshll.u32 [#allocation2], 4
          %s174 = int_to_ptr.vmem [resolvable:$true] %s173
          %179 = dma.hbm_to_vmem [thread:$0]  %s1, 1024, %s174, [#allocation3], 64, 64, 4
        $region16: #{dnn_forward.1} parent=11 // pred_fallthru
          _
        // Predicated region
        $region17: #{dnn_forward.1} parent=11 // pred_check
          %p180 = pneg %p84
        $region18: #{dnn_forward.1} parent=11 // pred_check_branch
          %182 = sbr.rel (%p180) target = $region20
        $region19: #{dnn_forward.1} parent=11 // pred_region
          %s184 = ssub.s32 1024, 1024
          %185 = vsyncadd [#allocation6], %s184
          %s186 = sshll.u32 [#allocation5], 4
          %s187 = int_to_ptr.vmem [resolvable:$true] %s186
          %192 = dma.hbm_to_vmem [thread:$0]  %s2, 1024, %s187, [#allocation6], 64, 64, 4
        $region20: #{dnn_forward.1} parent=11 // pred_fallthru
          _
        // Predicated region
        $region21: #{dnn_forward.1} parent=11 // pred_check
          %p193 = pneg %p105
        $region22: #{dnn_forward.1} parent=11 // pred_check_branch
          %195 = sbr.rel (%p193) target = $region24
        $region23: #{dnn_forward.1} parent=11 // pred_region
          _
        $region24: #{dnn_forward.1} parent=11 // pred_fallthru
          _
        // Predicated region
        $region25: #{dnn_forward.1} parent=11 // pred_check
          %p196 = pneg %p126
        $region26: #{dnn_forward.1} parent=11 // pred_check_branch
          %198 = sbr.rel (%p196) target = $region28
        $region27: #{dnn_forward.1} parent=11 // pred_region
          _
        $region28: #{dnn_forward.1} parent=11 // pred_fallthru
          _
      $region12: #{dnn_forward.1} parent=5 // pred_fallthru
        _
      %p199 = scmp.lt.s32.totalorder %s16, 2
      // Predicated region
      $region29: #{dnn_forward.1} parent=5 // pred_check
        %p200 = pneg %p199
      $region30: #{dnn_forward.1} parent=5 // pred_check_branch
        %202 = sbr.rel (%p200) target = $region32
      $region31: #{dnn_forward.1} parent=5 // pred_region
        // Predicated region
        $region33: #{dnn_forward.1} parent=31 // pred_check
          %p203 = pneg %p36
        $region34: #{dnn_forward.1} parent=31 // pred_check_branch
          %205 = sbr.rel (%p203) target = $region36
        $region35: #{dnn_forward.1} parent=31 // pred_region
          %p206 = scmp.lt.s32.totalorder %s16, 1
          %s207 = scalar_select %p206, %s16, 1
          %s208 = smul.addr %s207, 4
          %s209 = scalar_lea.vmem %s0, %s208
        $region36: #{dnn_forward.1} parent=31 // pred_fallthru
          _
      $region32: #{dnn_forward.1} parent=5 // pred_fallthru
        _
      %p210 = scmp.le.s32.totalorder 1, %s16
      %p211 = scmp.lt.s32.totalorder %s16, 3
      %p212 = pnand %p210, %p211
      %p213 = pneg %p212
      // Predicated region
      $region37: #{dnn_forward.1} parent=5 // pred_check
        _
      $region38: #{dnn_forward.1} parent=5 // pred_check_branch
        %215 = sbr.rel (%p212) target = $region40
      $region39: #{dnn_forward.1} parent=5 // pred_region
        %s216 = ssub.s32 %s16, 1
        // Predicated region
        $region41: #{dnn_forward.1} parent=39 // pred_check
          %p217 = pneg %p63
        $region42: #{dnn_forward.1} parent=39 // pred_check_branch
          %219 = sbr.rel (%p217) target = $region44
        $region43: #{dnn_forward.1} parent=39 // pred_region
          %220 = dma.done [#allocation3], 1024
        $region44: #{dnn_forward.1} parent=39 // pred_fallthru
          _
        // Predicated region
        $region45: #{dnn_forward.1} parent=39 // pred_check
          %p221 = pneg %p84
        $region46: #{dnn_forward.1} parent=39 // pred_check_branch
          %223 = sbr.rel (%p221) target = $region48
        $region47: #{dnn_forward.1} parent=39 // pred_region
          %224 = dma.done [#allocation6], 1024
        $region48: #{dnn_forward.1} parent=39 // pred_fallthru
          _
        %p225 = scmp.lt.s32.totalorder %s21, 1
        %s226 = scalar_select %p225, %s21, 1
        %s227 = smul.addr %s226, 4
        %s228 = scalar_lea.vmem %s0, %s227
        %p229 = pneg %p42
        %p230 = pneg %p39
        %p231 = pneg %p63
        %p232 = pneg %p60
        %p233 = pneg %p84
        %p234 = pneg %p81
        %p235 = pneg %p105
        %p236 = pneg %p102
        %p237 = pneg %p126
        %p238 = pneg %p123
        %p239 = pneg %p152
        %p240 = pneg %p149
        %s241 = sand.u32 %s139, 1
        %s242 = scalar_lea.sflag [#allocation4], %s241
        %s243 = sand.u32 %s139, 1
        %s244 = smul.addr %s243, 8
        %s245 = scalar_lea.vmem [#allocation7], %s244
        %p246 = scmp.lt.s32.totalorder %s21, 1
        %s247 = scalar_select %p246, %s21, 1
        %s248 = smul.addr %s247, 4
        %s249 = scalar_lea.vmem %s0, %s248
        %v251 = vld [vmem:[%s249] sm:$0xf]
        %v252 = vld [vmem:[#allocation2] sm:$0xf]
        %v253 = vld [vmem:[#allocation2 + $0x4] sm:$0xf]
        %v254 = vld [vmem:[#allocation2 + $0x8] sm:$0xf]
        %v255 = vld [vmem:[#allocation2 + $0xc] sm:$0xf]
        %v256 = vld [vmem:[#allocation2 + $0x10] sm:$0xf]
        %v257 = vld [vmem:[#allocation2 + $0x14] sm:$0xf]
        %v258 = vld [vmem:[#allocation2 + $0x18] sm:$0xf]
        %v259 = vld [vmem:[#allocation2 + $0x1c] sm:$0xf]
        %v260 = vld [vmem:[#allocation2 + $0x20] sm:$0xf]
        %v261 = vld [vmem:[#allocation2 + $0x24] sm:$0xf]
        %v262 = vld [vmem:[#allocation2 + $0x28] sm:$0xf]
        %v263 = vld [vmem:[#allocation2 + $0x2c] sm:$0xf]
        %v264 = vld [vmem:[#allocation2 + $0x30] sm:$0xf]
        %v265 = vld [vmem:[#allocation2 + $0x34] sm:$0xf]
        %v266 = vld [vmem:[#allocation2 + $0x38] sm:$0xf]
        %v267 = vld [vmem:[#allocation2 + $0x3c] sm:$0xf]
        %v268 = vld [vmem:[%s4] sm:$0x1]
        %v269 = vlaneseq
        %v270 = vshrl.u32 %v269, 7
        %v271 = vsub.s32 0, %v270
        %v272 = vrot.slane %v268, %v271
        %v289 = vunpack.c.l.b16 %v252
        %v290 = vunpack.c.l.b16 %v253
        %v291 = vunpack.c.l.b16 %v254
        %v292 = vunpack.c.l.b16 %v255
        %v293 = vunpack.c.l.b16 %v256
        %v294 = vunpack.c.l.b16 %v257
        %v295 = vunpack.c.l.b16 %v258
        %v296 = vunpack.c.l.b16 %v259
        %v297 = vunpack.c.l.b16 %v260
        %v298 = vunpack.c.l.b16 %v261
        %v299 = vunpack.c.l.b16 %v262
        %v300 = vunpack.c.l.b16 %v263
        %v301 = vunpack.c.l.b16 %v264
        %v302 = vunpack.c.l.b16 %v265
        %v303 = vunpack.c.l.b16 %v266
        %v304 = vunpack.c.l.b16 %v267
        %v305 = vpack.c.b16 %v290, %v289
        %v306 = vpack.c.b16 %v292, %v291
        %v307 = vpack.c.b16 %v294, %v293
        %v308 = vpack.c.b16 %v296, %v295
        %v309 = vpack.c.b16 %v298, %v297
        %v310 = vpack.c.b16 %v300, %v299
        %v311 = vpack.c.b16 %v302, %v301
        %v312 = vpack.c.b16 %v304, %v303
        %321 = vmatprep.subr.bf16.mxu0 0
        %322 = vmatpush1.bf16.msra.mxu0 %v312
        %323 = vmatprep.subr.bf16.mxu0 0
        %324 = vmatpush1.bf16.msra.mxu0 %v311
        %325 = vmatprep.subr.bf16.mxu0 0
        %326 = vmatpush1.bf16.msra.mxu0 %v310
        %327 = vmatprep.subr.bf16.mxu0 0
        %328 = vmatpush1.bf16.msra.mxu0 %v309
        %329 = vmatprep.subr.bf16.mxu0 0
        %330 = vmatpush1.bf16.msra.mxu0 %v308
        %331 = vmatprep.subr.bf16.mxu0 0
        %332 = vmatpush1.bf16.msra.mxu0 %v307
        %333 = vmatprep.subr.bf16.mxu0 0
        %334 = vmatpush1.bf16.msra.mxu0 %v306
        %335 = vmatprep.subr.bf16.mxu0 0
        %336 = vmatpush1.bf16.msra.mxu0 %v305
        %337 = vmatprep.subr.bf16.mxu0 0
        %338 = vmatpush2.bf16.msra.mxu0 0
        %339 = vmatprep.subr.bf16.mxu0 0
        %340 = vmatpush2.bf16.msra.mxu0 0
        %341 = vmatprep.subr.bf16.mxu0 0
        %342 = vmatpush2.bf16.msra.mxu0 0
        %343 = vmatprep.subr.bf16.mxu0 0
        %344 = vmatpush2.bf16.msra.mxu0 0
        %345 = vmatprep.subr.bf16.mxu0 0
        %346 = vmatpush2.bf16.msra.mxu0 0
        %347 = vmatprep.subr.bf16.mxu0 0
        %348 = vmatpush2.bf16.msra.mxu0 0
        %349 = vmatprep.subr.bf16.mxu0 0
        %350 = vmatpush2.bf16.msra.mxu0 0
        %351 = vmatprep.subr.bf16.mxu0 0
        %352 = vmatpush2.bf16.msra.mxu0 0
        %353 = vmatprep.mubr.bf16.mxu0 0
        %354 = vmatmul.mubr.bf16.gmra.mxu0 %v251
        %v355 = vpop.f32.mrf.mxu0
        %v356 = vadd.f32 %v272, %v355
        %v357 = vpop.f32.mrf.mxu0
        %v358 = vpop.f32.mrf.mxu0
        %v359 = vpop.f32.mrf.mxu0
        %360 = vdwg.mxu0
        %v361 = vmax.f32 %v356, 0.0
        %v362 = vpack.c.bf16 %v361, %v361
        %v363 = vld [vmem:[#allocation5] sm:$0xf]
        %v364 = vld [vmem:[#allocation5 + $0x4] sm:$0xf]
        %v365 = vld [vmem:[#allocation5 + $0x8] sm:$0xf]
        %v366 = vld [vmem:[#allocation5 + $0xc] sm:$0xf]
        %v367 = vld [vmem:[#allocation5 + $0x10] sm:$0xf]
        %v368 = vld [vmem:[#allocation5 + $0x14] sm:$0xf]
        %v369 = vld [vmem:[#allocation5 + $0x18] sm:$0xf]
        %v370 = vld [vmem:[#allocation5 + $0x1c] sm:$0xf]
        %v371 = vld [vmem:[#allocation5 + $0x20] sm:$0xf]
        %v372 = vld [vmem:[#allocation5 + $0x24] sm:$0xf]
        %v373 = vld [vmem:[#allocation5 + $0x28] sm:$0xf]
        %v374 = vld [vmem:[#allocation5 + $0x2c] sm:$0xf]
        %v375 = vld [vmem:[#allocation5 + $0x30] sm:$0xf]
        %v376 = vld [vmem:[#allocation5 + $0x34] sm:$0xf]
        %v377 = vld [vmem:[#allocation5 + $0x38] sm:$0xf]
        %v378 = vld [vmem:[#allocation5 + $0x3c] sm:$0xf]
        %v379 = vld [vmem:[%s4 + $0x1] sm:$0x1]
        %v380 = vlaneseq
        %v381 = vshrl.u32 %v380, 7
        %v382 = vsub.s32 0, %v381
        %v383 = vrot.slane %v379, %v382
        %v400 = vunpack.c.l.b16 %v363
        %v401 = vunpack.c.l.b16 %v364
        %v402 = vunpack.c.l.b16 %v365
        %v403 = vunpack.c.l.b16 %v366
        %v404 = vunpack.c.l.b16 %v367
        %v405 = vunpack.c.l.b16 %v368
        %v406 = vunpack.c.l.b16 %v369
        %v407 = vunpack.c.l.b16 %v370
        %v408 = vunpack.c.l.b16 %v371
        %v409 = vunpack.c.l.b16 %v372
        %v410 = vunpack.c.l.b16 %v373
        %v411 = vunpack.c.l.b16 %v374
        %v412 = vunpack.c.l.b16 %v375
        %v413 = vunpack.c.l.b16 %v376
        %v414 = vunpack.c.l.b16 %v377
        %v415 = vunpack.c.l.b16 %v378
        %v416 = vpack.c.b16 %v401, %v400
        %v417 = vpack.c.b16 %v403, %v402
        %v418 = vpack.c.b16 %v405, %v404
        %v419 = vpack.c.b16 %v407, %v406
        %v420 = vpack.c.b16 %v409, %v408
        %v421 = vpack.c.b16 %v411, %v410
        %v422 = vpack.c.b16 %v413, %v412
        %v423 = vpack.c.b16 %v415, %v414
        %432 = vmatprep.subr.bf16.mxu0 0
        %433 = vmatpush1.bf16.msra.mxu0 %v423
        %434 = vmatprep.subr.bf16.mxu0 0
        %435 = vmatpush1.bf16.msra.mxu0 %v422
        %436 = vmatprep.subr.bf16.mxu0 0
        %437 = vmatpush1.bf16.msra.mxu0 %v421
        %438 = vmatprep.subr.bf16.mxu0 0
        %439 = vmatpush1.bf16.msra.mxu0 %v420
        %440 = vmatprep.subr.bf16.mxu0 0
        %441 = vmatpush1.bf16.msra.mxu0 %v419
        %442 = vmatprep.subr.bf16.mxu0 0
        %443 = vmatpush1.bf16.msra.mxu0 %v418
        %444 = vmatprep.subr.bf16.mxu0 0
        %445 = vmatpush1.bf16.msra.mxu0 %v417
        %446 = vmatprep.subr.bf16.mxu0 0
        %447 = vmatpush1.bf16.msra.mxu0 %v416
        %448 = vmatprep.subr.bf16.mxu0 0
        %449 = vmatpush2.bf16.msra.mxu0 0
        %450 = vmatprep.subr.bf16.mxu0 0
        %451 = vmatpush2.bf16.msra.mxu0 0
        %452 = vmatprep.subr.bf16.mxu0 0
        %453 = vmatpush2.bf16.msra.mxu0 0
        %454 = vmatprep.subr.bf16.mxu0 0
        %455 = vmatpush2.bf16.msra.mxu0 0
        %456 = vmatprep.subr.bf16.mxu0 0
        %457 = vmatpush2.bf16.msra.mxu0 0
        %458 = vmatprep.subr.bf16.mxu0 0
        %459 = vmatpush2.bf16.msra.mxu0 0
        %460 = vmatprep.subr.bf16.mxu0 0
        %461 = vmatpush2.bf16.msra.mxu0 0
        %462 = vmatprep.subr.bf16.mxu0 0
        %463 = vmatpush2.bf16.msra.mxu0 0
        %464 = vmatprep.mubr.bf16.mxu0 0
        %465 = vmatmul.mubr.bf16.gmra.mxu0 %v362
        %v466 = vpop.f32.mrf.mxu0
        %v467 = vadd.f32 %v383, %v466
        %v468 = vpop.f32.mrf.mxu0
        %v469 = vpop.f32.mrf.mxu0
        %v470 = vpop.f32.mrf.mxu0
        %471 = vdwg.mxu0
        %v472 = vmax.f32 %v467, 0.0
        %v473 = vpack.c.bf16 %v472, %v472
        %v474 = vld [vmem:[%s3] sm:$0xf]
        %v475 = vld [vmem:[%s3 + $0x4] sm:$0xf]
        %v476 = vld [vmem:[%s3 + $0x8] sm:$0xf]
        %v477 = vld [vmem:[%s3 + $0xc] sm:$0xf]
        %v478 = vld [vmem:[%s3 + $0x10] sm:$0xf]
        %v479 = vld [vmem:[%s3 + $0x14] sm:$0xf]
        %v480 = vld [vmem:[%s3 + $0x18] sm:$0xf]
        %v481 = vld [vmem:[%s3 + $0x1c] sm:$0xf]
        %v482 = vld [vmem:[%s3 + $0x20] sm:$0xf]
        %v483 = vld [vmem:[%s3 + $0x24] sm:$0xf]
        %v484 = vld [vmem:[%s3 + $0x28] sm:$0xf]
        %v485 = vld [vmem:[%s3 + $0x2c] sm:$0xf]
        %v486 = vld [vmem:[%s3 + $0x30] sm:$0xf]
        %v487 = vld [vmem:[%s3 + $0x34] sm:$0xf]
        %v488 = vld [vmem:[%s3 + $0x38] sm:$0xf]
        %v489 = vld [vmem:[%s3 + $0x3c] sm:$0xf]
        %v490 = vld [vmem:[%s4 + $0x2] sm:$0x1]
        %v491 = vlaneseq
        %v492 = vshrl.u32 %v491, 7
        %v493 = vsub.s32 0, %v492
        %v494 = vrot.slane %v490, %v493
        %v511 = vunpack.c.l.b16 %v474
        %v512 = vunpack.c.l.b16 %v475
        %v513 = vunpack.c.l.b16 %v476
        %v514 = vunpack.c.l.b16 %v477
        %v515 = vunpack.c.l.b16 %v478
        %v516 = vunpack.c.l.b16 %v479
        %v517 = vunpack.c.l.b16 %v480
        %v518 = vunpack.c.l.b16 %v481
        %v519 = vunpack.c.l.b16 %v482
        %v520 = vunpack.c.l.b16 %v483
        %v521 = vunpack.c.l.b16 %v484
        %v522 = vunpack.c.l.b16 %v485
        %v523 = vunpack.c.l.b16 %v486
        %v524 = vunpack.c.l.b16 %v487
        %v525 = vunpack.c.l.b16 %v488
        %v526 = vunpack.c.l.b16 %v489
        %v527 = vpack.c.b16 %v512, %v511
        %v528 = vpack.c.b16 %v514, %v513
        %v529 = vpack.c.b16 %v516, %v515
        %v530 = vpack.c.b16 %v518, %v517
        %v531 = vpack.c.b16 %v520, %v519
        %v532 = vpack.c.b16 %v522, %v521
        %v533 = vpack.c.b16 %v524, %v523
        %v534 = vpack.c.b16 %v526, %v525
        %543 = vmatprep.subr.bf16.mxu0 0
        %544 = vmatpush1.bf16.msra.mxu0 %v534
        %545 = vmatprep.subr.bf16.mxu0 0
        %546 = vmatpush1.bf16.msra.mxu0 %v533
        %547 = vmatprep.subr.bf16.mxu0 0
        %548 = vmatpush1.bf16.msra.mxu0 %v532
        %549 = vmatprep.subr.bf16.mxu0 0
        %550 = vmatpush1.bf16.msra.mxu0 %v531
        %551 = vmatprep.subr.bf16.mxu0 0
        %552 = vmatpush1.bf16.msra.mxu0 %v530
        %553 = vmatprep.subr.bf16.mxu0 0
        %554 = vmatpush1.bf16.msra.mxu0 %v529
        %555 = vmatprep.subr.bf16.mxu0 0
        %556 = vmatpush1.bf16.msra.mxu0 %v528
        %557 = vmatprep.subr.bf16.mxu0 0
        %558 = vmatpush1.bf16.msra.mxu0 %v527
        %559 = vmatprep.subr.bf16.mxu0 0
        %560 = vmatpush2.bf16.msra.mxu0 0
        %561 = vmatprep.subr.bf16.mxu0 0
        %562 = vmatpush2.bf16.msra.mxu0 0
        %563 = vmatprep.subr.bf16.mxu0 0
        %564 = vmatpush2.bf16.msra.mxu0 0
        %565 = vmatprep.subr.bf16.mxu0 0
        %566 = vmatpush2.bf16.msra.mxu0 0
        %567 = vmatprep.subr.bf16.mxu0 0
        %568 = vmatpush2.bf16.msra.mxu0 0
        %569 = vmatprep.subr.bf16.mxu0 0
        %570 = vmatpush2.bf16.msra.mxu0 0
        %571 = vmatprep.subr.bf16.mxu0 0
        %572 = vmatpush2.bf16.msra.mxu0 0
        %573 = vmatprep.subr.bf16.mxu0 0
        %574 = vmatpush2.bf16.msra.mxu0 0
        %575 = vmatprep.mubr.bf16.mxu0 0
        %576 = vmatmul.mubr.bf16.gmra.mxu0 %v473
        %v577 = vpop.f32.mrf.mxu0
        %v578 = vadd.f32 %v494, %v577
        %v579 = vpop.f32.mrf.mxu0
        %v580 = vpop.f32.mrf.mxu0
        %v581 = vpop.f32.mrf.mxu0
        %582 = vdwg.mxu0
        %583 = vst [vmem:[%s245] sm:$0xff] %v578
        %s584 = sand.u32 %s139, 1
        %s585 = scalar_lea.sflag [#allocation4], %s584
        %s586 = sand.u32 %s139, 1
        %s587 = smul.addr %s586, 8
        %s588 = scalar_lea.vmem [#allocation7], %s587
        // Predicated region
        $region49: #{dnn_forward.1} parent=39 // pred_check
          %p589 = pneg %p149
        $region50: #{dnn_forward.1} parent=39 // pred_check_branch
          %591 = sbr.rel (%p589) target = $region52
        $region51: #{dnn_forward.1} parent=39 // pred_region
          %s593 = ssub.s32 128, 128
          %594 = vsyncadd %s585, %s593
          %s595 = smul.addr %s21, 128
          %s596 = scalar_lea.hbm %s5, %s595
          %s598 = sshll.u32 %s588, 4
          %s599 = int_to_ptr.vmem [resolvable:$true] %s598
          %601 = dma.vmem_to_hbm [thread:$0]  %s599, 128, %s596, %s585
        $region52: #{dnn_forward.1} parent=39 // pred_fallthru
          _
      $region40: #{dnn_forward.1} parent=5 // pred_fallthru
        _
      %p602 = scmp.le.s32.totalorder 2, %s16
      // Predicated region
      $region53: #{dnn_forward.1} parent=5 // pred_check
        %p603 = pneg %p602
      $region54: #{dnn_forward.1} parent=5 // pred_check_branch
        %605 = sbr.rel (%p603) target = $region56
      $region55: #{dnn_forward.1} parent=5 // pred_region
        %s606 = ssub.s32 %s16, 2
        // Predicated region
        $region57: #{dnn_forward.1} parent=55 // pred_check
          %p607 = pneg %p155
        $region58: #{dnn_forward.1} parent=55 // pred_check_branch
          %609 = sbr.rel (%p607) target = $region60
        $region59: #{dnn_forward.1} parent=55 // pred_region
          %s610 = sand.u32 %s140, 1
          %s611 = scalar_lea.sflag [#allocation4], %s610
          %s612 = sand.u32 %s140, 1
          %s613 = smul.addr %s612, 8
          %s614 = scalar_lea.vmem [#allocation7], %s613
          %615 = dma.done %s611, 128
        $region60: #{dnn_forward.1} parent=55 // pred_fallthru
          _
      $region56: #{dnn_forward.1} parent=5 // pred_fallthru
        _
    $region6: #{dnn_forward.1} parent=1 // loop_footer
      %s20 = sadd.s32 1, %s16
    $region7: #{dnn_forward.1} parent=1 // loop_footer_branch
      %15 = sbr.rel target = $region3
    $region8: #{dnn_forward.1} parent=1 // loop_exit
      _
    %616 = vsyncpa [#allocation3], 1
    %s617 = scalar_lea.sflag [#allocation3], 1
    %618 = vsyncpa %s617, 1
    %619 = vsyncpa [#allocation6], 1
    %620 = vsyncpa [#allocation4], 1
    %s621 = scalar_lea.sflag [#allocation4], 1
    %622 = vsyncpa %s621, 1

</llo_original>
